<compile_context>
chip_gen: v7x
topology: tpu7x:2x2x1
jax: 0.10.0
libtpu: 0.0.40
codegen_flags: <defaults>
</compile_context>

<pallas_src>
import functools

import jax
import jax.numpy as jnp
from jax.experimental import pallas as pl
from jax.experimental.pallas import tpu as pltpu


def _round_up(v, m):
    return (v + m - 1) // m * m


@functools.lru_cache(maxsize=None)
def _chip_info():
    """Returns (vmem_capacity_bytes, two_tensorcores)."""
    try:
        vmem = int(pltpu.get_tpu_info().vmem_capacity_bytes)
    except Exception:
        # Info query unavailable in this build: assume the tightest chip (v7x).
        vmem = 64 << 20
    # 64 MiB VMEM per TensorCore <=> v7x (2 TCs/chip); 128 MiB <=> v5e/v6e (1 TC).
    return vmem, vmem <= (64 << 20)


# ----------------------------- kernels ------------------------------------ #

def _mlp_kernel(x_ref, w1_ref, b1_ref, w2_ref, b2_ref, o_ref):
    # fc1 on the MXU (bf16 operands, f32 accumulation). Fused epilogue: h is
    # produced directly in bf16, so no f32 (tm, hidden) intermediate is stored
    # and re-loaded (the store slot is the next saturator after the MXU).
    x = x_ref[...].astype(jnp.bfloat16)
    h = jnp.dot(x, w1_ref[...], preferred_element_type=jnp.float32)
    h = jnp.maximum(h + b1_ref[...], 0.0).astype(jnp.bfloat16)
    # fc2 on the MXU; bias add in f32, then cast to the output dtype.
    o = jnp.dot(h, w2_ref[...], preferred_element_type=jnp.float32)
    o_ref[...] = (o + b2_ref[...]).astype(o_ref.dtype)


def _mlp_ktiled_kernel(x_ref, w1_ref, b1_ref, w2_ref, b2_ref, o_ref, acc_ref):
    # hidden (= 2*d_model) is split across the k grid axis: fc1 produces only
    # the (tm, tk) slice of h that this step consumes, so fc1 is never
    # recomputed and the live intermediate stays small (v7x 64 MiB VMEM).
    k = pl.program_id(1)

    @pl.when(k == 0)
    def _():
        acc_ref[...] = jnp.zeros_like(acc_ref)

    x = x_ref[...].astype(jnp.bfloat16)
    h = jnp.dot(x, w1_ref[...], preferred_element_type=jnp.float32)
    h = jnp.maximum(h + b1_ref[...], 0.0).astype(jnp.bfloat16)
    acc_ref[...] += jnp.dot(h, w2_ref[...], preferred_element_type=jnp.float32)

    @pl.when(k == pl.num_programs(1) - 1)
    def _():
        o_ref[...] = (acc_ref[...] + b2_ref[...]).astype(o_ref.dtype)


# ----------------------------- wrapper ------------------------------------ #

@functools.partial(jax.jit, static_argnames=("block_rows",))
def token_embedding(x, w1, b1, w2, b2, *, block_rows=None):
    """x: (B, L, c_in) -> (B, L, d_model). Weights stored as (in, out)."""
    B, L, c_in = x.shape
    hidden = w1.shape[1]            # 2 * d_model
    d_model = w2.shape[1]
    out_dtype = x.dtype
    xbytes = x.dtype.itemsize
    M = B * L
    x2 = x.reshape(M, c_in)         # free row-major reshape

    vmem_cap, two_tc = _chip_info()
    big_vmem = vmem_cap >= (96 << 20)           # v5e / v6e (128 MiB per TC)
    if block_rows is None:
        block_rows = 1024 if big_vmem else 512

    # No-ops when the caller used prepare_token_embedding_params (recommended).
    w1 = w1.astype(jnp.bfloat16)
    w2 = w2.astype(jnp.bfloat16)
    b1r = b1.reshape(1, hidden).astype(jnp.float32)
    b2r = b2.reshape(1, d_model).astype(jnp.float32)

    # ---- row tiling: balanced grid, big tiles ------------------------------
    if M <= 8:
        tm, grid_m = M, 1                       # single full-extent tile
    else:
        grid_m = max(1, pl.cdiv(M, block_rows))
        if two_tc:                              # only v7x benefits from >=2 steps
            grid_m = max(grid_m, 2)
            grid_m += grid_m % 2                # even -> both TCs busy on last pass
        tm = min(_round_up(pl.cdiv(M, grid_m), 8), _round_up(M, 8))
        grid_m = pl.cdiv(M, tm)

    # ---- weight residency / K-tiling decision ------------------------------
    w_bytes = 2                                 # bf16 weights
    resident_bytes = (c_in * hidden + hidden * d_model) * w_bytes
    w_budget = (24 << 20) if big_vmem else (8 << 20)
    use_ktiling = (resident_bytes > w_budget) and hidden > 512

    flops = 2 * M * (c_in * hidden + hidden * d_model)
    bytes_accessed = (M * c_in * xbytes + resident_bytes
                      + (hidden + d_model) * 4 + M * d_model * out_dtype.itemsize)
    cost = pl.CostEstimate(flops=flops, transcendentals=0,
                           bytes_accessed=bytes_accessed)

    # TODO(synk): relayout (tm, d_model<128) output to a lane-dense
    # (tm*d_model/128, 128) slab once the in-kernel reshape is verified to
    # lower onto the XLU; until then narrow outputs use masked stores.

    if not use_ktiling:
        # Constant-index (resident) operands: a second pipeline buffer is pure
        # VMEM waste; only bother single-buffering when the weights are big.
        resident_kw = {}
        if resident_bytes > (2 << 20) and hasattr(pl, "Buffered"):
            resident_kw = {"pipeline_mode": pl.Buffered(1)}
        wbuf = 1 if resident_kw else 2

        grid = (grid_m,)
        in_specs = [
            pl.BlockSpec((tm, c_in), lambda i: (i, 0)),                      # x
            pl.BlockSpec((c_in, hidden), lambda i: (0, 0), **resident_kw),   # w1
            pl.BlockSpec((1, hidden), lambda i: (0, 0), **resident_kw),      # b1
            pl.BlockSpec((hidden, d_model), lambda i: (0, 0), **resident_kw),# w2
            pl.BlockSpec((1, d_model), lambda i: (0, 0), **resident_kw),     # b2
        ]
        out_specs = pl.BlockSpec((tm, d_model), lambda i: (i, 0))
        kernel = _mlp_kernel
        scratch = []
        dim_sem = ("parallel",)
        vmem_est = (2 * tm * c_in * xbytes
                    + 2 * tm * d_model * out_dtype.itemsize
                    + wbuf * (resident_bytes + (hidden + d_model) * 4)
                    + tm * hidden * (4 + 2)      # transient f32 acc + bf16 h
                    + tm * c_in * 2)             # bf16 copy of x tile
    else:
        # K-tiling over hidden; tk a multiple of 256 (v6e/v7x 2x256^2 MXU).
        per_col = (c_in + d_model) * w_bytes
        tk = max(256, ((w_budget // 2) // per_col) // 256 * 256)
        tk = min(tk, _round_up(hidden, 256))
        grid_k = pl.cdiv(hidden, tk)

        grid = (grid_m, grid_k)
        in_specs = [
            pl.BlockSpec((tm, c_in), lambda i, k: (i, 0)),       # x (revisited)
            pl.BlockSpec((c_in, tk), lambda i, k: (0, k)),       # w1 slice
            pl.BlockSpec((1, tk), lambda i, k: (0, k)),          # b1 slice
            pl.BlockSpec((tk, d_model), lambda i, k: (k, 0)),    # w2 slice
            pl.BlockSpec((1, d_model), lambda i, k: (0, 0)),     # b2 (resident)
        ]
        out_specs = pl.BlockSpec((tm, d_model), lambda i, k: (i, 0))
        kernel = _mlp_ktiled_kernel
        scratch = [pltpu.VMEM((tm, d_model), jnp.float32)]
        dim_sem = ("parallel", "arbitrary")
        vmem_est = (2 * tm * c_in * xbytes
                    + 2 * tm * d_model * out_dtype.itemsize
                    + 2 * (c_in * tk + tk * d_model) * w_bytes
                    + 2 * (tk + d_model) * 4
                    + tm * d_model * 4           # f32 accumulator scratch
                    + tm * tk * (4 + 2)          # transient h slice
                    + tm * c_in * 2)

    cap = (96 << 20) if big_vmem else (48 << 20)   # never exceed v7x's 64 MiB
    vmem_limit = max(16 << 20, min(int(vmem_est * 1.25) + (2 << 20), cap))

    out2 = pl.pallas_call(
        kernel,
        out_shape=jax.ShapeDtypeStruct((M, d_model), out_dtype),
        grid_spec=pltpu.PrefetchScalarGridSpec(
            num_scalar_prefetch=0,
            grid=grid,
            in_specs=in_specs,
            out_specs=out_specs,
            scratch_shapes=scratch,
        ),
        compiler_params=pltpu.CompilerParams(
            dimension_semantics=dim_sem,
            vmem_limit_bytes=int(vmem_limit),
        ),
        cost_estimate=cost,
    )(x2, w1, b1r, w2, b2r)

    return out2.reshape(B, L, d_model)


# ----------------------------- params -------------------------------------- #

def init_token_embedding_params(key, c_in, d_model, dtype=jnp.float32):
    """nn.Linear-style U(-1/sqrt(fan_in), 1/sqrt(fan_in)) init, (in, out) layout.

    (nn.LazyLinear's deferred c_in is resolved by the caller supplying the
    patch feature count here, so no kernel-side equivalent is needed.)
    """
    hidden = 2 * d_model
    k1, k2, k3, k4 = jax.random.split(key, 4)
    bound1 = 1.0 / jnp.sqrt(c_in)
    bound2 = 1.0 / jnp.sqrt(hidden)
    w1 = jax.random.uniform(k1, (c_in, hidden), dtype, -bound1, bound1)
    b1 = jax.random.uniform(k2, (hidden,), dtype, -bound1, bound1)
    w2 = jax.random.uniform(k3, (hidden, d_model), dtype, -bound2, bound2)
    b2 = jax.random.uniform(k4, (d_model,), dtype, -bound2, bound2)
    return w1, b1, w2, b2


def prepare_token_embedding_params(w1, b1, w2, b2):
    """One-time cast: bf16 weights (MXU feed, half the HBM/VMEM), f32 biases.

    Do this once after init / checkpoint load -- NOT per forward call.
    """
    return (w1.astype(jnp.bfloat16), b1.astype(jnp.float32),
            w2.astype(jnp.bfloat16), b2.astype(jnp.float32))


# ----------------------------- demo / check -------------------------------- #

if __name__ == "__main__":
    B, L, c_in, d_model = 2, 8, 32, 32

    key = jax.random.PRNGKey(0)
    kx, kp = jax.random.split(key)
    x = jax.random.normal(kx, (B, L, c_in), jnp.float32)
    w1, b1, w2, b2 = init_token_embedding_params(kp, c_in, d_model)
    w1c, b1c, w2c, b2c = prepare_token_embedding_params(w1, b1, w2, b2)

    out = token_embedding(x, w1c, b1c, w2c, b2c)
    out = jax.block_until_ready(out)
    assert out.shape == (B, L, d_model)

    # Tight check vs a reference with identical numerics (bf16 MXU operands,
    # f32 accumulation, f32 bias epilogue, bf16 h).
    xb = x.reshape(-1, c_in).astype(jnp.bfloat16)
    h = jnp.dot(xb, w1c, preferred_element_type=jnp.float32) + b1c
    h = jnp.maximum(h, 0.0).astype(jnp.bfloat16)
    ref = jnp.dot(h, w2c, preferred_element_type=jnp.float32) + b2c
    ref = ref.reshape(B, L, d_model)
    assert jnp.allclose(out, ref, atol=2e-3, rtol=2e-3)

    # Loose sanity check vs the pure-f32 PyTorch-equivalent forward
    # (bf16 MXU feed introduces ~1e-2 absolute drift at these magnitudes).
    ref32 = (jnp.maximum(x.reshape(-1, c_in) @ w1 + b1, 0.0) @ w2 + b2)
    ref32 = ref32.reshape(B, L, d_model)
    assert jnp.allclose(out, ref32, atol=1e-1, rtol=1e-1)

    print("KERNEL_OK")
</pallas_src>

<mosaic_0001>
module attributes {stable_mosaic.version = 11 : i64} {
  func.func @_mlp_kernel(%arg0: i32, %arg1: memref<8x32xf32, #tpu.memory_space<vmem>>, %arg2: memref<32x64xbf16, #tpu.memory_space<vmem>>, %arg3: memref<1x64xf32, #tpu.memory_space<vmem>>, %arg4: memref<64x32xbf16, #tpu.memory_space<vmem>>, %arg5: memref<1x32xf32, #tpu.memory_space<vmem>>, %arg6: memref<8x32xf32, #tpu.memory_space<vmem>>) attributes {dimension_semantics = [#tpu.dimension_semantics<parallel>], iteration_bounds = array<i64: 2>, scalar_prefetch = 0 : i64, scratch_operands = 0 : i64, tpu.core_type = #tpu.core_type<tc>, window_params = [{transform_indices = @transform_0, window_bounds = array<i64: 8, 32>}, {pipeline_mode = #tpu.pipeline_mode<synchronous>, transform_indices = @transform_1, window_bounds = array<i64: 32, 64>}, {pipeline_mode = #tpu.pipeline_mode<synchronous>, transform_indices = @transform_2, window_bounds = array<i64: 1, 64>}, {pipeline_mode = #tpu.pipeline_mode<synchronous>, transform_indices = @transform_3, window_bounds = array<i64: 64, 32>}, {pipeline_mode = #tpu.pipeline_mode<synchronous>, transform_indices = @transform_4, window_bounds = array<i64: 1, 32>}, {transform_indices = @transform_5, window_bounds = array<i64: 8, 32>}]} {
    %c0 = arith.constant 0 : index
    %c0_0 = arith.constant 0 : index
    %0 = vector.load %arg1[%c0, %c0_0] : memref<8x32xf32, #tpu.memory_space<vmem>>, vector<8x32xf32>
    %1 = arith.truncf %0 : vector<8x32xf32> to vector<8x32xbf16>
    %c0_1 = arith.constant 0 : index
    %c0_2 = arith.constant 0 : index
    %2 = vector.load %arg2[%c0_1, %c0_2] : memref<32x64xbf16, #tpu.memory_space<vmem>>, vector<32x64xbf16>
    %cst = arith.constant dense<0.000000e+00> : vector<8x64xf32>
    %3 = tpu.matmul %1, %2, %cst {dimension_numbers = #tpu.dot_dimension_numbers<[1], [0], [0], [1], [0, 0, 1, 1], [], []>} : vector<8x32xbf16>, vector<32x64xbf16>, vector<8x64xf32> -> vector<8x64xf32>
    %c0_3 = arith.constant 0 : index
    %c0_4 = arith.constant 0 : index
    %4 = vector.load %arg3[%c0_3, %c0_4] : memref<1x64xf32, #tpu.memory_space<vmem>>, vector<1x64xf32>
    %5 = vector.broadcast %4 : vector<1x64xf32> to vector<8x64xf32>
    %6 = arith.addf %3, %5 : vector<8x64xf32>
    %cst_5 = arith.constant 0.000000e+00 : f32
    %7 = vector.broadcast %cst_5 : f32 to vector<8x64xf32>
    %8 = arith.maximumf %6, %7 : vector<8x64xf32>
    %9 = arith.truncf %8 : vector<8x64xf32> to vector<8x64xbf16>
    %c0_6 = arith.constant 0 : index
    %c0_7 = arith.constant 0 : index
    %10 = vector.load %arg4[%c0_6, %c0_7] : memref<64x32xbf16, #tpu.memory_space<vmem>>, vector<64x32xbf16>
    %cst_8 = arith.constant dense<0.000000e+00> : vector<8x32xf32>
    %11 = tpu.matmul %9, %10, %cst_8 {dimension_numbers = #tpu.dot_dimension_numbers<[1], [0], [0], [1], [0, 0, 1, 1], [], []>} : vector<8x64xbf16>, vector<64x32xbf16>, vector<8x32xf32> -> vector<8x32xf32>
    %c0_9 = arith.constant 0 : index
    %c0_10 = arith.constant 0 : index
    %12 = vector.load %arg5[%c0_9, %c0_10] : memref<1x32xf32, #tpu.memory_space<vmem>>, vector<1x32xf32>
    %13 = vector.broadcast %12 : vector<1x32xf32> to vector<8x32xf32>
    %14 = arith.addf %11, %13 : vector<8x32xf32>
    %c0_11 = arith.constant 0 : index
    %c0_12 = arith.constant 0 : index
    %15 = vector.load %arg6[%c0_11, %c0_12] : memref<8x32xf32, #tpu.memory_space<vmem>>, vector<8x32xf32>
    tpu.vector_store %arg6[%c0_11, %c0_12], %14 {strides = array<i32>} : memref<8x32xf32, #tpu.memory_space<vmem>>, vector<8x32xf32>,
    return
  }
  func.func @transform_0(%arg0: i32) -> (i32, i32) {
    %c0_i32 = arith.constant 0 : i32
    %c0_i32_0 = arith.constant 0 : i32
    return %arg0, %c0_i32 : i32, i32
  }
  func.func @transform_1(%arg0: i32) -> (i32, i32) {
    %c0_i32 = arith.constant 0 : i32
    %c0_i32_0 = arith.constant 0 : i32
    %c0_i32_1 = arith.constant 0 : i32
    return %c0_i32, %c0_i32_0 : i32, i32
  }
  func.func @transform_2(%arg0: i32) -> (i32, i32) {
    %c0_i32 = arith.constant 0 : i32
    %c0_i32_0 = arith.constant 0 : i32
    %c0_i32_1 = arith.constant 0 : i32
    return %c0_i32, %c0_i32_0 : i32, i32
  }
  func.func @transform_3(%arg0: i32) -> (i32, i32) {
    %c0_i32 = arith.constant 0 : i32
    %c0_i32_0 = arith.constant 0 : i32
    %c0_i32_1 = arith.constant 0 : i32
    return %c0_i32, %c0_i32_0 : i32, i32
  }
  func.func @transform_4(%arg0: i32) -> (i32, i32) {
    %c0_i32 = arith.constant 0 : i32
    %c0_i32_0 = arith.constant 0 : i32
    %c0_i32_1 = arith.constant 0 : i32
    return %c0_i32, %c0_i32_0 : i32, i32
  }
  func.func @transform_5(%arg0: i32) -> (i32, i32) {
    %c0_i32 = arith.constant 0 : i32
    %c0_i32_0 = arith.constant 0 : i32
    return %arg0, %c0_i32 : i32, i32
  }
}

</mosaic_0001>

<llo_original>
// kernel: token_embedding.1
$region0: #{token_embedding.1}
  #allocation0 [shape = 'u32[]', space=smem, size = 0x4, offset = 0x4, fixed_abs, tag = 'smem constant byte address 0x4 - core index']
  #allocation1 [shape = 'u32[144,128]{1,0:T(1,128)}', space=vmem, size = 0x12000, scoped, tag = 'internal scratch']
  %s0 = inlined_call_operand.vmem [shape: f32[16,32], index: 0, kind: input, shape index: {}]
  %s1 = inlined_call_operand.vmem [shape: bf16[32,64], index: 1, kind: input, shape index: {}]
  %s2 = inlined_call_operand.vmem [shape: f32[1,64], index: 2, kind: input, shape index: {}]
  %s3 = inlined_call_operand.vmem [shape: bf16[64,32], index: 3, kind: input, shape index: {}]
  %s4 = inlined_call_operand.vmem [shape: f32[1,32], index: 4, kind: input, shape index: {}]
  %s5 = inlined_call_operand.hbm [shape: f32[16,32], index: 5, kind: output, shape index: {}]
  %s6 = sld [smem:[#allocation0]]
  $region53: #{token_embedding.1} parent=0
    _
  %s8 = ssub.s32 1, %s6
  %s9 = scalar_select 0, %s8, %s6
  $region1: #{token_embedding.1} parent=0
    #allocation2 [shape = 'u8[8192]{0}', space=vmem, size = 0x2000, scoped, tag = 'output window, operand 0']
    #allocation3 [shape = 's32[2]{0}', space=sflag, size = 0x8, scoped, tag = 'scoped memory for token_embedding.1']
    %10 = vsyncpa [#allocation3], 0
    %s11 = scalar_lea.sflag [#allocation3], 1
    %12 = vsyncpa %s11, 0
    loop: start=0, step=1, limit=4
    $region2: #{token_embedding.1} parent=1 // loop_pre_header
      _
    $region3: #{token_embedding.1} parent=1 // loop_header
      %s14 = sphi 0, %s18
      %p15 = scmp.ge.s32.totalorder %s14, 4
      %s24 = sphi 0, %s26
      %s27 = sphi 0, %s24
      %s28 = sphi 0, %s27
      %s44 = sphi 0, %s28
      %s48 = sphi 0, %s48
      %s50 = sphi 0, %s48
      %s51 = sphi 0, %s50
      %s65 = sphi 0, %s51
      %s69 = sphi 0, %s69
      %s71 = sphi 0, %s69
      %s72 = sphi 0, %s71
      %s86 = sphi 0, %s72
      %s90 = sphi 0, %s90
      %s92 = sphi 0, %s90
      %s93 = sphi 0, %s92
      %s107 = sphi 0, %s93
      %s111 = sphi 0, %s111
      %s113 = sphi 0, %s111
      %s114 = sphi 0, %s113
      %s128 = sphi 0, %s114
      %s134 = sphi 0, %s136
      %s137 = sphi 0, %s134
      %s138 = sphi 0, %s137
      %s154 = sphi 0, %s138
    $region4: #{token_embedding.1} parent=1 // loop_header_branch
      %17 = sbr.rel (%p15) target = $region8
    $region5: #{token_embedding.1} parent=1 // loop_body
      %s19 = ssub.s32 %s14, 1
      %s20 = ssub.s32 %s14, 2
      %s21 = sadd.s32 %s14, 1
      %s22 = ssub.s32 %s14, %s21
      %p23 = scmp.eq.s32.totalorder %s22, 0
      %s25 = sadd.s32 %s24, 1
      %s26 = scalar_select %p23, %s24, %s25
      %p29 = pneg %p23
      %p30 = scmp.eq.s32.totalorder %s14, 1
      %p31 = por %p29, %p30
      %p32 = scmp.ne.s32.totalorder %s24, %s27
      %p33 = scmp.eq.s32.totalorder %s14, 0
      %p34 = por %p32, %p33
      %p35 = scmp.ne.s32.totalorder %s24, %s27
      %p36 = scmp.eq.s32.totalorder %s19, 1
      %p37 = por %p35, %p36
      %p38 = scmp.ne.s32.totalorder %s27, %s28
      %p39 = scmp.eq.s32.totalorder %s19, 0
      %p40 = por %p38, %p39
      %p41 = scmp.ne.s32.totalorder %s27, %s28
      %p42 = scmp.eq.s32.totalorder %s20, 1
      %p43 = por %p41, %p42
      %p45 = scmp.ne.s32.totalorder %s28, %s44
      %p46 = scmp.eq.s32.totalorder %s20, 0
      %p47 = por %p45, %p46
      %s49 = sadd.s32 %s48, 1
      %p52 = scmp.eq.s32.totalorder %s14, 1
      %p53 = scmp.ne.s32.totalorder %s48, %s50
      %p54 = scmp.eq.s32.totalorder %s14, 0
      %p55 = por %p53, %p54
      %p56 = scmp.ne.s32.totalorder %s48, %s50
      %p57 = scmp.eq.s32.totalorder %s19, 1
      %p58 = por %p56, %p57
      %p59 = scmp.ne.s32.totalorder %s50, %s51
      %p60 = scmp.eq.s32.totalorder %s19, 0
      %p61 = por %p59, %p60
      %p62 = scmp.ne.s32.totalorder %s50, %s51
      %p63 = scmp.eq.s32.totalorder %s20, 1
      %p64 = por %p62, %p63
      %p66 = scmp.ne.s32.totalorder %s51, %s65
      %p67 = scmp.eq.s32.totalorder %s20, 0
      %p68 = por %p66, %p67
      %s70 = sadd.s32 %s69, 1
      %p73 = scmp.eq.s32.totalorder %s14, 1
      %p74 = scmp.ne.s32.totalorder %s69, %s71
      %p75 = scmp.eq.s32.totalorder %s14, 0
      %p76 = por %p74, %p75
      %p77 = scmp.ne.s32.totalorder %s69, %s71
      %p78 = scmp.eq.s32.totalorder %s19, 1
      %p79 = por %p77, %p78
      %p80 = scmp.ne.s32.totalorder %s71, %s72
      %p81 = scmp.eq.s32.totalorder %s19, 0
      %p82 = por %p80, %p81
      %p83 = scmp.ne.s32.totalorder %s71, %s72
      %p84 = scmp.eq.s32.totalorder %s20, 1
      %p85 = por %p83, %p84
      %p87 = scmp.ne.s32.totalorder %s72, %s86
      %p88 = scmp.eq.s32.totalorder %s20, 0
      %p89 = por %p87, %p88
      %s91 = sadd.s32 %s90, 1
      %p94 = scmp.eq.s32.totalorder %s14, 1
      %p95 = scmp.ne.s32.totalorder %s90, %s92
      %p96 = scmp.eq.s32.totalorder %s14, 0
      %p97 = por %p95, %p96
      %p98 = scmp.ne.s32.totalorder %s90, %s92
      %p99 = scmp.eq.s32.totalorder %s19, 1
      %p100 = por %p98, %p99
      %p101 = scmp.ne.s32.totalorder %s92, %s93
      %p102 = scmp.eq.s32.totalorder %s19, 0
      %p103 = por %p101, %p102
      %p104 = scmp.ne.s32.totalorder %s92, %s93
      %p105 = scmp.eq.s32.totalorder %s20, 1
      %p106 = por %p104, %p105
      %p108 = scmp.ne.s32.totalorder %s93, %s107
      %p109 = scmp.eq.s32.totalorder %s20, 0
      %p110 = por %p108, %p109
      %s112 = sadd.s32 %s111, 1
      %p115 = scmp.eq.s32.totalorder %s14, 1
      %p116 = scmp.ne.s32.totalorder %s111, %s113
      %p117 = scmp.eq.s32.totalorder %s14, 0
      %p118 = por %p116, %p117
      %p119 = scmp.ne.s32.totalorder %s111, %s113
      %p120 = scmp.eq.s32.totalorder %s19, 1
      %p121 = por %p119, %p120
      %p122 = scmp.ne.s32.totalorder %s113, %s114
      %p123 = scmp.eq.s32.totalorder %s19, 0
      %p124 = por %p122, %p123
      %p125 = scmp.ne.s32.totalorder %s113, %s114
      %p126 = scmp.eq.s32.totalorder %s20, 1
      %p127 = por %p125, %p126
      %p129 = scmp.ne.s32.totalorder %s114, %s128
      %p130 = scmp.eq.s32.totalorder %s20, 0
      %p131 = por %p129, %p130
      %s132 = ssub.s32 %s14, %s21
      %p133 = scmp.eq.s32.totalorder %s132, 0
      %s135 = sadd.s32 %s134, 1
      %s136 = scalar_select %p133, %s134, %s135
      %p139 = pneg %p133
      %p140 = scmp.eq.s32.totalorder %s14, 1
      %p141 = por %p139, %p140
      %p142 = scmp.ne.s32.totalorder %s134, %s137
      %p143 = scmp.eq.s32.totalorder %s14, 0
      %p144 = por %p142, %p143
      %p145 = scmp.ne.s32.totalorder %s134, %s137
      %p146 = scmp.eq.s32.totalorder %s19, 1
      %p147 = por %p145, %p146
      %p148 = scmp.ne.s32.totalorder %s137, %s138
      %p149 = scmp.eq.s32.totalorder %s19, 0
      %p150 = por %p148, %p149
      %p151 = scmp.ne.s32.totalorder %s137, %s138
      %p152 = scmp.eq.s32.totalorder %s20, 1
      %p153 = por %p151, %p152
      %p155 = scmp.ne.s32.totalorder %s138, %s154
      %p156 = scmp.eq.s32.totalorder %s20, 0
      %p157 = por %p155, %p156
      %p158 = scmp.le.s32.totalorder 1, %s14
      %p159 = scmp.lt.s32.totalorder %s14, 3
      %p160 = pnand %p158, %p159
      %p161 = pneg %p160
      // Predicated region
      $region9: #{token_embedding.1} parent=5 // pred_check
        _
      $region10: #{token_embedding.1} parent=5 // pred_check_branch
        %163 = sbr.rel (%p160) target = $region12
      $region11: #{token_embedding.1} parent=5 // pred_region
        %s164 = ssub.s32 %s14, 1
        // Predicated region
        $region13: #{token_embedding.1} parent=11 // pred_check
          %p165 = pneg %p61
        $region14: #{token_embedding.1} parent=11 // pred_check_branch
          %167 = sbr.rel (%p165) target = $region16
        $region15: #{token_embedding.1} parent=11 // pred_region
          _
        $region16: #{token_embedding.1} parent=11 // pred_fallthru
          _
        // Predicated region
        $region17: #{token_embedding.1} parent=11 // pred_check
          %p168 = pneg %p82
        $region18: #{token_embedding.1} parent=11 // pred_check_branch
          %170 = sbr.rel (%p168) target = $region20
        $region19: #{token_embedding.1} parent=11 // pred_region
          _
        $region20: #{token_embedding.1} parent=11 // pred_fallthru
          _
        // Predicated region
        $region21: #{token_embedding.1} parent=11 // pred_check
          %p171 = pneg %p103
        $region22: #{token_embedding.1} parent=11 // pred_check_branch
          %173 = sbr.rel (%p171) target = $region24
        $region23: #{token_embedding.1} parent=11 // pred_region
          _
        $region24: #{token_embedding.1} parent=11 // pred_fallthru
          _
        // Predicated region
        $region25: #{token_embedding.1} parent=11 // pred_check
          %p174 = pneg %p124
        $region26: #{token_embedding.1} parent=11 // pred_check_branch
          %176 = sbr.rel (%p174) target = $region28
        $region27: #{token_embedding.1} parent=11 // pred_region
          _
        $region28: #{token_embedding.1} parent=11 // pred_fallthru
          _
      $region12: #{token_embedding.1} parent=5 // pred_fallthru
        _
      %p177 = scmp.lt.s32.totalorder %s14, 2
      // Predicated region
      $region29: #{token_embedding.1} parent=5 // pred_check
        %p178 = pneg %p177
      $region30: #{token_embedding.1} parent=5 // pred_check_branch
        %180 = sbr.rel (%p178) target = $region32
      $region31: #{token_embedding.1} parent=5 // pred_region
        // Predicated region
        $region33: #{token_embedding.1} parent=31 // pred_check
          %p181 = pneg %p34
        $region34: #{token_embedding.1} parent=31 // pred_check_branch
          %183 = sbr.rel (%p181) target = $region36
        $region35: #{token_embedding.1} parent=31 // pred_region
          %p184 = scmp.lt.s32.totalorder %s14, 1
          %s185 = scalar_select %p184, %s14, 1
          %s186 = smul.addr %s185, 8
          %s187 = scalar_lea.vmem %s0, %s186
        $region36: #{token_embedding.1} parent=31 // pred_fallthru
          _
      $region32: #{token_embedding.1} parent=5 // pred_fallthru
        _
      %p188 = scmp.le.s32.totalorder 1, %s14
      %p189 = scmp.lt.s32.totalorder %s14, 3
      %p190 = pnand %p188, %p189
      %p191 = pneg %p190
      // Predicated region
      $region37: #{token_embedding.1} parent=5 // pred_check
        _
      $region38: #{token_embedding.1} parent=5 // pred_check_branch
        %193 = sbr.rel (%p190) target = $region40
      $region39: #{token_embedding.1} parent=5 // pred_region
        %s194 = ssub.s32 %s14, 1
        %p195 = scmp.lt.s32.totalorder %s19, 1
        %s196 = scalar_select %p195, %s19, 1
        %s197 = smul.addr %s196, 8
        %s198 = scalar_lea.vmem %s0, %s197
        %p199 = pneg %p40
        %p200 = pneg %p37
        %p201 = pneg %p61
        %p202 = pneg %p58
        %p203 = pneg %p82
        %p204 = pneg %p79
        %p205 = pneg %p103
        %p206 = pneg %p100
        %p207 = pneg %p124
        %p208 = pneg %p121
        %p209 = pneg %p150
        %p210 = pneg %p147
        %s211 = sand.u32 %s137, 1
        %s212 = scalar_lea.sflag [#allocation3], %s211
        %s213 = sand.u32 %s137, 1
        %s214 = smul.addr %s213, 8
        %s215 = scalar_lea.vmem [#allocation2], %s214
        %p216 = scmp.lt.s32.totalorder %s19, 1
        %s217 = scalar_select %p216, %s19, 1
        %s218 = smul.addr %s217, 8
        %s219 = scalar_lea.vmem %s0, %s218
        %v221 = vld [vmem:[%s219] sm:$0xff]
        %v222 = vpack.c.bf16 %v221, %v221
        %v223 = vld [vmem:[%s1] sm:$0xf]
        %v224 = vld [vmem:[%s1 + $0x4] sm:$0xf]
        %v225 = vld [vmem:[%s1 + $0x8] sm:$0xf]
        %v226 = vld [vmem:[%s1 + $0xc] sm:$0xf]
        %v227 = vld [vmem:[%s2] sm:$0x1]
        %v229 = vlaneseq
        %v230 = vshrl.u32 %v229, 7
        %v231 = vsub.s32 0, %v230
        %v232 = vrot.slane %v227, %v231
        %v238 = vunpack.c.l.b16 %v223
        %v239 = vunpack.c.l.b16 %v224
        %v240 = vunpack.c.l.b16 %v225
        %v241 = vunpack.c.l.b16 %v226
        %v242 = vpack.c.b16 %v239, %v238
        %v243 = vpack.c.b16 %v241, %v240
        %vm246 = vcmask 261120
        %v248 = vsel %vm246, %v222, 0
        %250 = vmatprep.subr.bf16.mxu0 0
        %251 = vmatpush1.bf16.msra.mxu0 %v242
        %252 = vmatprep.subr.bf16.mxu0 0
        %253 = vmatpush1.bf16.msra.mxu0 %v243
        %254 = vmatprep.subr.bf16.mxu0 0
        %255 = vmatpush1.bf16.msra.mxu0 0
        %256 = vmatprep.subr.bf16.mxu0 0
        %257 = vmatpush1.bf16.msra.mxu0 0
        %258 = vmatprep.subr.bf16.mxu0 0
        %259 = vmatpush1.bf16.msra.mxu0 0
        %260 = vmatprep.subr.bf16.mxu0 0
        %261 = vmatpush1.bf16.msra.mxu0 0
        %262 = vmatprep.subr.bf16.mxu0 0
        %263 = vmatpush1.bf16.msra.mxu0 0
        %264 = vmatprep.subr.bf16.mxu0 0
        %265 = vmatpush1.bf16.msra.mxu0 0
        %266 = vmatprep.subr.bf16.mxu0 0
        %267 = vmatpush1.bf16.msra.mxu0 0
        %268 = vmatprep.subr.bf16.mxu0 0
        %269 = vmatpush1.bf16.msra.mxu0 0
        %270 = vmatprep.subr.bf16.mxu0 0
        %271 = vmatpush1.bf16.msra.mxu0 0
        %272 = vmatprep.subr.bf16.mxu0 0
        %273 = vmatpush1.bf16.msra.mxu0 0
        %274 = vmatprep.subr.bf16.mxu0 0
        %275 = vmatpush1.bf16.msra.mxu0 0
        %276 = vmatprep.subr.bf16.mxu0 0
        %277 = vmatpush1.bf16.msra.mxu0 0
        %278 = vmatprep.subr.bf16.mxu0 0
        %279 = vmatpush1.bf16.msra.mxu0 0
        %280 = vmatprep.subr.bf16.mxu0 0
        %281 = vmatpush1.bf16.msra.mxu0 0
        %282 = vmatprep.mubr.bf16.mxu0 0
        %283 = vmatmul.mubr.bf16.gmra.mrb[0].mxu0 %v248
        %v284 = vpop.f32.mrb[0].mxu0
        %v285 = vadd.f32 %v232, %v284
        %v286 = vpop.f32.mrb[0].mxu0
        %v287 = vpop.f32.mrb[0].mxu0
        %v288 = vpop.f32.mrb[0].mxu0
        %289 = vdwg.mxu0
        %v290 = vmax.f32 %v285, 0.0
        %v291 = vpack.c.bf16 %v290, %v290
        %v292 = vld [vmem:[%s3] sm:$0xf]
        %v293 = vld [vmem:[%s3 + $0x4] sm:$0xf]
        %v294 = vld [vmem:[%s3 + $0x8] sm:$0xf]
        %v295 = vld [vmem:[%s3 + $0xc] sm:$0xf]
        %v296 = vld [vmem:[%s3 + $0x10] sm:$0xf]
        %v297 = vld [vmem:[%s3 + $0x14] sm:$0xf]
        %v298 = vld [vmem:[%s3 + $0x18] sm:$0xf]
        %v299 = vld [vmem:[%s3 + $0x1c] sm:$0xf]
        %v300 = vld [vmem:[%s4] sm:$0x1]
        %v302 = vlaneseq
        %v303 = vshrl.u32 %v302, 7
        %v304 = vsub.s32 0, %v303
        %v305 = vrot.slane %v300, %v304
        %v315 = vunpack.c.l.b16 %v292
        %v316 = vunpack.c.l.b16 %v293
        %v317 = vunpack.c.l.b16 %v294
        %v318 = vunpack.c.l.b16 %v295
        %v319 = vunpack.c.l.b16 %v296
        %v320 = vunpack.c.l.b16 %v297
        %v321 = vunpack.c.l.b16 %v298
        %v322 = vunpack.c.l.b16 %v299
        %v323 = vpack.c.b16 %v316, %v315
        %v324 = vpack.c.b16 %v318, %v317
        %v325 = vpack.c.b16 %v320, %v319
        %v326 = vpack.c.b16 %v322, %v321
        %vm331 = vcmask 523264
        %v333 = vsel %vm331, %v291, 0
        %335 = vmatprep.subr.bf16.mxu0 0
        %336 = vmatpush1.bf16.msra.mxu0 %v323
        %337 = vmatprep.subr.bf16.mxu0 0
        %338 = vmatpush1.bf16.msra.mxu0 %v324
        %339 = vmatprep.subr.bf16.mxu0 0
        %340 = vmatpush1.bf16.msra.mxu0 %v325
        %341 = vmatprep.subr.bf16.mxu0 0
        %342 = vmatpush1.bf16.msra.mxu0 %v326
        %343 = vmatprep.subr.bf16.mxu0 0
        %344 = vmatpush1.bf16.msra.mxu0 0
        %345 = vmatprep.subr.bf16.mxu0 0
        %346 = vmatpush1.bf16.msra.mxu0 0
        %347 = vmatprep.subr.bf16.mxu0 0
        %348 = vmatpush1.bf16.msra.mxu0 0
        %349 = vmatprep.subr.bf16.mxu0 0
        %350 = vmatpush1.bf16.msra.mxu0 0
        %351 = vmatprep.subr.bf16.mxu0 0
        %352 = vmatpush1.bf16.msra.mxu0 0
        %353 = vmatprep.subr.bf16.mxu0 0
        %354 = vmatpush1.bf16.msra.mxu0 0
        %355 = vmatprep.subr.bf16.mxu0 0
        %356 = vmatpush1.bf16.msra.mxu0 0
        %357 = vmatprep.subr.bf16.mxu0 0
        %358 = vmatpush1.bf16.msra.mxu0 0
        %359 = vmatprep.subr.bf16.mxu0 0
        %360 = vmatpush1.bf16.msra.mxu0 0
        %361 = vmatprep.subr.bf16.mxu0 0
        %362 = vmatpush1.bf16.msra.mxu0 0
        %363 = vmatprep.subr.bf16.mxu0 0
        %364 = vmatpush1.bf16.msra.mxu0 0
        %365 = vmatprep.subr.bf16.mxu0 0
        %366 = vmatpush1.bf16.msra.mxu0 0
        %367 = vmatprep.mubr.bf16.mxu0 0
        %368 = vmatmul.mubr.bf16.gmra.mrb[0].mxu0 %v333
        %v369 = vpop.f32.mrb[0].mxu0
        %v370 = vadd.f32 %v305, %v369
        %v371 = vpop.f32.mrb[0].mxu0
        %v372 = vpop.f32.mrb[0].mxu0
        %v373 = vpop.f32.mrb[0].mxu0
        %374 = vdwg.mxu0
        %375 = vst.msk [vmem:[%s215] sm:$0xff] %vm246, %v370
        %s376 = sand.u32 %s137, 1
        %s377 = scalar_lea.sflag [#allocation3], %s376
        %s378 = sand.u32 %s137, 1
        %s379 = smul.addr %s378, 8
        %s380 = scalar_lea.vmem [#allocation2], %s379
        // Predicated region
        $region41: #{token_embedding.1} parent=39 // pred_check
          %p381 = pneg %p147
        $region42: #{token_embedding.1} parent=39 // pred_check_branch
          %383 = sbr.rel (%p381) target = $region44
        $region43: #{token_embedding.1} parent=39 // pred_region
          %s385 = ssub.s32 128, 128
          %386 = vsyncadd %s377, %s385
          %s387 = smul.addr %s19, 128
          %s388 = scalar_lea.hbm %s5, %s387
          %s390 = sshll.u32 %s380, 4
          %s391 = int_to_ptr.vmem [resolvable:$true] %s390
          %393 = dma.vmem_to_hbm [thread:$0]  %s391, 128, %s388, %s377
        $region44: #{token_embedding.1} parent=39 // pred_fallthru
          _
      $region40: #{token_embedding.1} parent=5 // pred_fallthru
        _
      %p394 = scmp.le.s32.totalorder 2, %s14
      // Predicated region
      $region45: #{token_embedding.1} parent=5 // pred_check
        %p395 = pneg %p394
      $region46: #{token_embedding.1} parent=5 // pred_check_branch
        %397 = sbr.rel (%p395) target = $region48
      $region47: #{token_embedding.1} parent=5 // pred_region
        %s398 = ssub.s32 %s14, 2
        // Predicated region
        $region49: #{token_embedding.1} parent=47 // pred_check
          %p399 = pneg %p153
        $region50: #{token_embedding.1} parent=47 // pred_check_branch
          %401 = sbr.rel (%p399) target = $region52
        $region51: #{token_embedding.1} parent=47 // pred_region
          %s402 = sand.u32 %s138, 1
          %s403 = scalar_lea.sflag [#allocation3], %s402
          %s404 = sand.u32 %s138, 1
          %s405 = smul.addr %s404, 8
          %s406 = scalar_lea.vmem [#allocation2], %s405
          %407 = dma.done %s403, 128
        $region52: #{token_embedding.1} parent=47 // pred_fallthru
          _
      $region48: #{token_embedding.1} parent=5 // pred_fallthru
        _
    $region6: #{token_embedding.1} parent=1 // loop_footer
      %s18 = sadd.s32 1, %s14
    $region7: #{token_embedding.1} parent=1 // loop_footer_branch
      %13 = sbr.rel target = $region3
    $region8: #{token_embedding.1} parent=1 // loop_exit
      _
    %408 = vsyncpa [#allocation3], 1
    %s409 = scalar_lea.sflag [#allocation3], 1
    %410 = vsyncpa %s409, 1

</llo_original>
